<compile_context>
chip_gen: v5e
topology: v5e:2x2
jax: 0.10.0
libtpu: 0.0.40
codegen_flags: <defaults>
</compile_context>

<pallas_src>
import jax
import jax.numpy as jnp
from jax.experimental import pallas as pl
from jax.experimental.pallas import tpu as pltpu

C = 16            # in_channels (dense1 in_features = 48 = 3 * C)
H = 16
W = 16
P = H * W         # 256 = 2 x 128 lanes  (flattened pixel axis, lane-dense)
HIDDEN = 128

# 3x3 taps (cross-correlation, as torch conv2d) -- used by the JAX reference only.
_SOBEL_X = [((0, 0), -1.0), ((0, 2), 1.0),
            ((1, 0), -2.0), ((1, 2), 2.0),
            ((2, 0), -1.0), ((2, 2), 1.0)]
_SOBEL_Y = [((0, 0), -1.0), ((0, 1), -2.0), ((0, 2), -1.0),
            ((2, 0), 1.0), ((2, 1), 2.0), ((2, 2), 1.0)]


def _make_nca_kernel(bb):
    """Kernel for a batch-block of `bb` images per grid step."""
    R = bb * C

    def kernel(state_ref, mask_ref, w1_ref, b1_ref, w2_ref, b2_ref, out_ref):
        # state_ref / out_ref : (bb, C, P) f32 ; mask_ref : (bb, C, P) bf16 (0/1)
        # w1_ref : (HIDDEN, 3C)  b1_ref : (HIDDEN, 1)
        # w2_ref : (C, HIDDEN)   b2_ref : (C, 1)
        x3 = state_ref[...]                       # (bb, C, P)
        x = x3.reshape(R, P)                      # merge majors; minor dim kept

        # ---- boundary masks on the flattened pixel axis (hoisted once) ----
        pix = jax.lax.broadcasted_iota(jnp.int32, (1, P), 1)
        colj = jnp.bitwise_and(pix, W - 1)        # j = p % W   (W is a power of 2)
        left_ok = colj >= 1                       # tap from column j-1 exists
        right_ok = colj <= W - 2                  # tap from column j+1 exists
        up_ok = pix >= W                          # tap from row i-1 exists
        down_ok = pix < P - W                     # tap from row i+1 exists

        def tap_l(v):   # v[i, j-1], zero outside the grid
            return jnp.where(left_ok, pltpu.roll(v, 1, axis=1), 0.0)

        def tap_r(v):   # v[i, j+1]
            return jnp.where(right_ok, pltpu.roll(v, P - 1, axis=1), 0.0)

        def tap_u(v):   # v[i-1, j]
            return jnp.where(up_ok, pltpu.roll(v, W, axis=1), 0.0)

        def tap_d(v):   # v[i+1, j]
            return jnp.where(down_ok, pltpu.roll(v, P - W, axis=1), 0.0)

        # ---- depthwise "perception" conv (sobel_x / sobel_y), separable ----
        xl, xr = tap_l(x), tap_r(x)
        d = xr - xl                               # horizontal derivative
        s = xl + 2.0 * x + xr                     # horizontal smoothing
        sx = tap_u(d) + 2.0 * d + tap_d(d)        # sobel_x  (zero-padded conv)
        sy = tap_d(s) - tap_u(s)                  # sobel_y

        # ---- per-pixel MLP: dense1 (48->128) + relu, dense2 (128->16) ----
        # Weights on the left keep pixels lane-dense; one K=48 contraction.
        percep = jnp.concatenate(
            [sx.reshape(bb, C, P), sy.reshape(bb, C, P), x3], axis=1)  # (bb,3C,P)
        w1b = jnp.broadcast_to(w1_ref[...], (bb, HIDDEN, 3 * C))
        h = jnp.einsum("bhk,bkp->bhp", w1b, percep,
                       preferred_element_type=jnp.float32) + b1_ref[...]
        h = jnp.maximum(h, 0.0)                   # (bb, HIDDEN, P)
        w2b = jnp.broadcast_to(w2_ref[...], (bb, C, HIDDEN))
        ds = jnp.einsum("bch,bhp->bcp", w2b, h,
                        preferred_element_type=jnp.float32) + b2_ref[...]

        # ---- stochastic update (mask is exact 0/1 in bf16) ----
        new_state = x3 + ds * mask_ref[...].astype(jnp.float32)    # (bb, C, P)

        # ---- alive masking: 3x3 max pool on alpha channel only, > 0.1 ----
        alpha = new_state[:, 3:4, :].reshape(bb, P)
        cm = jnp.maximum(jnp.maximum(tap_l(alpha), tap_r(alpha)), alpha)
        m = jnp.maximum(jnp.maximum(tap_u(cm), tap_d(cm)), cm)
        alive = (m > 0.1).astype(jnp.float32).reshape(bb, 1, P)

        out_ref[...] = new_state * alive

    return kernel


def _pick_batch_block(n, block_b):
    """Images per grid step; keeps grid >= 2 when n >= 2 (v7x megacore)."""
    if n <= 1:
        return max(n, 1)
    return max(1, min(block_b, (n + 1) // 2))


def nca_forward(state_nchw, mask_nchw, w1_torch, b1, w2_torch, b2, *, block_b=32):
    """state_nchw / mask_nchw: (N, C, H, W); weights in PyTorch (out, in) layout."""
    n = state_nchw.shape[0]
    bb = _pick_batch_block(n, block_b)
    n_pad = ((n + bb - 1) // bb) * bb

    # (N, C, H, W) -> (N, C, H*W): free reshape, pixels are the lane-dense
    # minor dim, channels sit on sublanes.  No transposes anywhere.
    state = jnp.reshape(state_nchw, (n, C, P)).astype(jnp.float32)
    mask = jnp.reshape(mask_nchw, (n, C, P)).astype(jnp.bfloat16)   # 0/1 exact
    if n_pad != n:
        state = jnp.concatenate(
            [state, jnp.zeros((n_pad - n, C, P), state.dtype)], axis=0)
        mask = jnp.concatenate(
            [mask, jnp.zeros((n_pad - n, C, P), mask.dtype)], axis=0)

    # torch perception feature order is 3*c + k (k=0:sx, 1:sy, 2:id); the kernel
    # builds features as k*C + c, so permute dense1's input columns.
    perm = jnp.array([3 * c + k for k in range(3) for c in range(C)], jnp.int32)
    w1k = w1_torch[:, perm].astype(jnp.float32)        # (HIDDEN, 3C), out x in
    w2k = w2_torch.astype(jnp.float32)                 # (C, HIDDEN),  out x in
    b1k = b1.reshape(HIDDEN, 1).astype(jnp.float32)
    b2k = b2.reshape(C, 1).astype(jnp.float32)

    out = pl.pallas_call(
        _make_nca_kernel(bb),
        out_shape=jax.ShapeDtypeStruct((n_pad, C, P), jnp.float32),
        grid_spec=pltpu.PrefetchScalarGridSpec(
            num_scalar_prefetch=0,
            grid=(n_pad // bb,),
            in_specs=[
                pl.BlockSpec((bb, C, P), lambda i: (i, 0, 0)),
                pl.BlockSpec((bb, C, P), lambda i: (i, 0, 0)),
                pl.BlockSpec((HIDDEN, 3 * C), lambda i: (0, 0)),
                pl.BlockSpec((HIDDEN, 1), lambda i: (0, 0)),
                pl.BlockSpec((C, HIDDEN), lambda i: (0, 0)),
                pl.BlockSpec((C, 1), lambda i: (0, 0)),
            ],
            out_specs=pl.BlockSpec((bb, C, P), lambda i: (i, 0, 0)),
        ),
        compiler_params=pltpu.CompilerParams(
            dimension_semantics=("parallel",),
            vmem_limit_bytes=48 * 1024 * 1024),
    )(state, mask, w1k, b1k, w2k, b2k)

    return jnp.reshape(out[:n], (n, C, H, W))


def _reference_forward(state_nchw, mask_nchw, w1_torch, b1, w2_torch, b2):
    """Plain-JAX reference, NHWC math matching PyTorch semantics."""
    state = jnp.transpose(state_nchw, (0, 2, 3, 1))
    mask = jnp.transpose(mask_nchw, (0, 2, 3, 1))
    pad = jnp.pad(state, ((0, 0), (1, 1), (1, 1), (0, 0)))

    def tap(di, dj):
        return pad[:, di:di + H, dj:dj + W, :]

    sx = sum(wgt * tap(di, dj) for (di, dj), wgt in _SOBEL_X)
    sy = sum(wgt * tap(di, dj) for (di, dj), wgt in _SOBEL_Y)

    perm = jnp.array([3 * c + k for k in range(3) for c in range(C)], jnp.int32)
    w1k = jnp.transpose(w1_torch[:, perm], (1, 0))
    w2k = jnp.transpose(w2_torch, (1, 0))

    p = jnp.concatenate([sx, sy, state], axis=-1)            # (N,H,W,3C)
    hid = jax.nn.relu(
        jnp.einsum("nhwk,kf->nhwf", p, w1k, precision="highest") + b1)
    ds = jnp.einsum("nhwf,fc->nhwc", hid, w2k, precision="highest") + b2
    new = state + ds * mask

    alpha = new[..., 3:4]
    apad = jnp.pad(alpha, ((0, 0), (1, 1), (1, 1), (0, 0)),
                   constant_values=-jnp.inf)
    m = jnp.full_like(alpha, -jnp.inf)
    for di in range(3):
        for dj in range(3):
            m = jnp.maximum(m, apad[:, di:di + H, dj:dj + W, :])
    alive = (m > 0.1).astype(jnp.float32)
    out = new * alive
    return jnp.transpose(out, (0, 3, 1, 2))


if __name__ == "__main__":
    key = jax.random.PRNGKey(0)
    k_state, k_mask, k_w1, k_b1, k_w2, k_b2 = jax.random.split(key, 6)

    N = 2
    state = jax.random.uniform(k_state, (N, C, H, W), jnp.float32,
                               minval=-0.2, maxval=0.6)
    # stochastic_update's (torch.rand < 0.5) mask, hoisted as an explicit input
    mask = jax.random.bernoulli(k_mask, 0.5, (N, C, H, W)).astype(jnp.float32)

    # Parameters in PyTorch (out, in) layout.  The module zero-inits
    # dense2.weight; a small non-zero weight is used here so the dense2 path is
    # actually exercised by the check (forward semantics are identical).
    w1 = 0.1 * jax.random.normal(k_w1, (HIDDEN, 3 * C), jnp.float32)
    b1 = 0.1 * jax.random.normal(k_b1, (HIDDEN,), jnp.float32)
    w2 = 0.05 * jax.random.normal(k_w2, (C, HIDDEN), jnp.float32)
    b2 = 0.1 * jax.random.normal(k_b2, (C,), jnp.float32)

    out = jax.block_until_ready(nca_forward(state, mask, w1, b1, w2, b2))
    ref = jax.block_until_ready(_reference_forward(state, mask, w1, b1, w2, b2))

    assert out.shape == (N, C, H, W)
    assert jnp.allclose(out, ref, rtol=2e-5, atol=2e-5), \
        f"max abs err = {jnp.max(jnp.abs(out - ref))}"

    print("KERNEL_OK")
</pallas_src>

<mosaic_0001>
module attributes {stable_mosaic.version = 11 : i64} {
  func.func @kernel(%arg0: i32, %arg1: memref<1x16x256xf32, #tpu.memory_space<vmem>>, %arg2: memref<1x16x256xbf16, #tpu.memory_space<vmem>>, %arg3: memref<128x48xf32, #tpu.memory_space<vmem>>, %arg4: memref<128x1xf32, #tpu.memory_space<vmem>>, %arg5: memref<16x128xf32, #tpu.memory_space<vmem>>, %arg6: memref<16x1xf32, #tpu.memory_space<vmem>>, %arg7: memref<1x16x256xf32, #tpu.memory_space<vmem>>) attributes {dimension_semantics = [#tpu.dimension_semantics<parallel>], iteration_bounds = array<i64: 2>, scalar_prefetch = 0 : i64, scratch_operands = 0 : i64, tpu.core_type = #tpu.core_type<tc>, window_params = [{transform_indices = @transform_0, window_bounds = array<i64: 1, 16, 256>}, {transform_indices = @transform_1, window_bounds = array<i64: 1, 16, 256>}, {pipeline_mode = #tpu.pipeline_mode<synchronous>, transform_indices = @transform_2, window_bounds = array<i64: 128, 48>}, {pipeline_mode = #tpu.pipeline_mode<synchronous>, transform_indices = @transform_3, window_bounds = array<i64: 128, 1>}, {pipeline_mode = #tpu.pipeline_mode<synchronous>, transform_indices = @transform_4, window_bounds = array<i64: 16, 128>}, {pipeline_mode = #tpu.pipeline_mode<synchronous>, transform_indices = @transform_5, window_bounds = array<i64: 16, 1>}, {transform_indices = @transform_6, window_bounds = array<i64: 1, 16, 256>}]} {
    %c0 = arith.constant 0 : index
    %c0_0 = arith.constant 0 : index
    %c0_1 = arith.constant 0 : index
    %0 = vector.load %arg1[%c0, %c0_0, %c0_1] : memref<1x16x256xf32, #tpu.memory_space<vmem>>, vector<1x16x256xf32>
    %1 = vector.shape_cast %0 : vector<1x16x256xf32> to vector<16x256xf32>
    %2 = tpu.iota {dimensions = array<i32: 1>} : vector<1x256xi32>
    %c15_i32 = arith.constant 15 : i32
    %3 = vector.broadcast %c15_i32 : i32 to vector<1x256xi32>
    %4 = arith.andi %2, %3 : vector<1x256xi32>
    %c1_i32 = arith.constant 1 : i32
    %5 = vector.broadcast %c1_i32 : i32 to vector<1x256xi32>
    %6 = arith.cmpi sge, %4, %5 : vector<1x256xi32>
    %c14_i32 = arith.constant 14 : i32
    %7 = vector.broadcast %c14_i32 : i32 to vector<1x256xi32>
    %8 = arith.cmpi sle, %4, %7 : vector<1x256xi32>
    %c16_i32 = arith.constant 16 : i32
    %9 = vector.broadcast %c16_i32 : i32 to vector<1x256xi32>
    %10 = arith.cmpi sge, %2, %9 : vector<1x256xi32>
    %c240_i32 = arith.constant 240 : i32
    %11 = vector.broadcast %c240_i32 : i32 to vector<1x256xi32>
    %12 = arith.cmpi slt, %2, %11 : vector<1x256xi32>
    %c1_i32_2 = arith.constant 1 : i32
    %13 = tpu.dynamic_rotate %1 by %c1_i32_2 dim 1 : vector<16x256xf32>, i32 -> vector<16x256xf32>
    %cst = arith.constant 0.000000e+00 : f32
    %14 = vector.shape_cast %6 : vector<1x256xi1> to vector<1x256xi1>
    %15 = vector.broadcast %14 : vector<1x256xi1> to vector<16x256xi1>
    %16 = vector.broadcast %cst : f32 to vector<16x256xf32>
    %17 = arith.select %15, %13, %16 : vector<16x256xi1>, vector<16x256xf32>
    %c255_i32 = arith.constant 255 : i32
    %18 = tpu.dynamic_rotate %1 by %c255_i32 dim 1 : vector<16x256xf32>, i32 -> vector<16x256xf32>
    %cst_3 = arith.constant 0.000000e+00 : f32
    %19 = vector.shape_cast %8 : vector<1x256xi1> to vector<1x256xi1>
    %20 = vector.broadcast %19 : vector<1x256xi1> to vector<16x256xi1>
    %21 = vector.broadcast %cst_3 : f32 to vector<16x256xf32>
    %22 = arith.select %20, %18, %21 : vector<16x256xi1>, vector<16x256xf32>
    %23 = arith.subf %22, %17 : vector<16x256xf32>
    %cst_4 = arith.constant 2.000000e+00 : f32
    %24 = vector.broadcast %cst_4 : f32 to vector<16x256xf32>
    %25 = arith.mulf %24, %1 : vector<16x256xf32>
    %26 = arith.addf %17, %25 : vector<16x256xf32>
    %27 = arith.addf %26, %22 : vector<16x256xf32>
    %c16_i32_5 = arith.constant 16 : i32
    %28 = tpu.dynamic_rotate %23 by %c16_i32_5 dim 1 : vector<16x256xf32>, i32 -> vector<16x256xf32>
    %cst_6 = arith.constant 0.000000e+00 : f32
    %29 = vector.shape_cast %10 : vector<1x256xi1> to vector<1x256xi1>
    %30 = vector.broadcast %29 : vector<1x256xi1> to vector<16x256xi1>
    %31 = vector.broadcast %cst_6 : f32 to vector<16x256xf32>
    %32 = arith.select %30, %28, %31 : vector<16x256xi1>, vector<16x256xf32>
    %cst_7 = arith.constant 2.000000e+00 : f32
    %33 = vector.broadcast %cst_7 : f32 to vector<16x256xf32>
    %34 = arith.mulf %33, %23 : vector<16x256xf32>
    %35 = arith.addf %32, %34 : vector<16x256xf32>
    %c240_i32_8 = arith.constant 240 : i32
    %36 = tpu.dynamic_rotate %23 by %c240_i32_8 dim 1 : vector<16x256xf32>, i32 -> vector<16x256xf32>
    %cst_9 = arith.constant 0.000000e+00 : f32
    %37 = vector.shape_cast %12 : vector<1x256xi1> to vector<1x256xi1>
    %38 = vector.broadcast %37 : vector<1x256xi1> to vector<16x256xi1>
    %39 = vector.broadcast %cst_9 : f32 to vector<16x256xf32>
    %40 = arith.select %38, %36, %39 : vector<16x256xi1>, vector<16x256xf32>
    %41 = arith.addf %35, %40 : vector<16x256xf32>
    %c240_i32_10 = arith.constant 240 : i32
    %42 = tpu.dynamic_rotate %27 by %c240_i32_10 dim 1 : vector<16x256xf32>, i32 -> vector<16x256xf32>
    %cst_11 = arith.constant 0.000000e+00 : f32
    %43 = vector.shape_cast %12 : vector<1x256xi1> to vector<1x256xi1>
    %44 = vector.broadcast %43 : vector<1x256xi1> to vector<16x256xi1>
    %45 = vector.broadcast %cst_11 : f32 to vector<16x256xf32>
    %46 = arith.select %44, %42, %45 : vector<16x256xi1>, vector<16x256xf32>
    %c16_i32_12 = arith.constant 16 : i32
    %47 = tpu.dynamic_rotate %27 by %c16_i32_12 dim 1 : vector<16x256xf32>, i32 -> vector<16x256xf32>
    %cst_13 = arith.constant 0.000000e+00 : f32
    %48 = vector.shape_cast %10 : vector<1x256xi1> to vector<1x256xi1>
    %49 = vector.broadcast %48 : vector<1x256xi1> to vector<16x256xi1>
    %50 = vector.broadcast %cst_13 : f32 to vector<16x256xf32>
    %51 = arith.select %49, %47, %50 : vector<16x256xi1>, vector<16x256xf32>
    %52 = arith.subf %46, %51 : vector<16x256xf32>
    %53 = vector.shape_cast %41 : vector<16x256xf32> to vector<1x16x256xf32>
    %54 = vector.shape_cast %52 : vector<16x256xf32> to vector<1x16x256xf32>
    %55 = tpu.concatenate %53, %54, %0 in 1 : vector<1x16x256xf32>, vector<1x16x256xf32>, vector<1x16x256xf32> -> vector<1x48x256xf32>
    %c0_14 = arith.constant 0 : index
    %c0_15 = arith.constant 0 : index
    %56 = vector.load %arg3[%c0_14, %c0_15] : memref<128x48xf32, #tpu.memory_space<vmem>>, vector<128x48xf32>
    %57 = vector.shape_cast %56 : vector<128x48xf32> to vector<1x128x48xf32>
    "tpu.trace_start"() <{level = 10 : i32, message = "bhk,bkp->bhp"}> : () -> ()
    %cst_16 = arith.constant dense<0.000000e+00> : vector<1x128x256xf32>
    %58 = tpu.matmul %57, %55, %cst_16 {dimension_numbers = #tpu.dot_dimension_numbers<[2], [1], [1], [2], [0, 0, 0, 1, 1, 2], [0], [0]>} : vector<1x128x48xf32>, vector<1x48x256xf32>, vector<1x128x256xf32> -> vector<1x128x256xf32>
    "tpu.trace_stop"() : () -> ()
    %c0_17 = arith.constant 0 : index
    %c0_18 = arith.constant 0 : index
    %59 = vector.load %arg4[%c0_17, %c0_18] : memref<128x1xf32, #tpu.memory_space<vmem>>, vector<128x1xf32>
    %60 = vector.shape_cast %59 : vector<128x1xf32> to vector<1x128x1xf32>
    %61 = vector.broadcast %60 : vector<1x128x1xf32> to vector<1x128x256xf32>
    %62 = arith.addf %58, %61 : vector<1x128x256xf32>
    %cst_19 = arith.constant 0.000000e+00 : f32
    %63 = vector.broadcast %cst_19 : f32 to vector<1x128x256xf32>
    %64 = arith.maximumf %62, %63 : vector<1x128x256xf32>
    %c0_20 = arith.constant 0 : index
    %c0_21 = arith.constant 0 : index
    %65 = vector.load %arg5[%c0_20, %c0_21] : memref<16x128xf32, #tpu.memory_space<vmem>>, vector<16x128xf32>
    %66 = vector.shape_cast %65 : vector<16x128xf32> to vector<1x16x128xf32>
    "tpu.trace_start"() <{level = 10 : i32, message = "bch,bhp->bcp"}> : () -> ()
    %cst_22 = arith.constant dense<0.000000e+00> : vector<1x16x256xf32>
    %67 = tpu.matmul %66, %64, %cst_22 {dimension_numbers = #tpu.dot_dimension_numbers<[2], [1], [1], [2], [0, 0, 0, 1, 1, 2], [0], [0]>} : vector<1x16x128xf32>, vector<1x128x256xf32>, vector<1x16x256xf32> -> vector<1x16x256xf32>
    "tpu.trace_stop"() : () -> ()
    %c0_23 = arith.constant 0 : index
    %c0_24 = arith.constant 0 : index
    %68 = vector.load %arg6[%c0_23, %c0_24] : memref<16x1xf32, #tpu.memory_space<vmem>>, vector<16x1xf32>
    %69 = vector.shape_cast %68 : vector<16x1xf32> to vector<1x16x1xf32>
    %70 = vector.broadcast %69 : vector<1x16x1xf32> to vector<1x16x256xf32>
    %71 = arith.addf %67, %70 : vector<1x16x256xf32>
    %c0_25 = arith.constant 0 : index
    %c0_26 = arith.constant 0 : index
    %c0_27 = arith.constant 0 : index
    %72 = vector.load %arg2[%c0_25, %c0_26, %c0_27] : memref<1x16x256xbf16, #tpu.memory_space<vmem>>, vector<1x16x256xbf16>
    %73 = arith.extf %72 : vector<1x16x256xbf16> to vector<1x16x256xf32>
    %74 = arith.mulf %71, %73 : vector<1x16x256xf32>
    %75 = arith.addf %0, %74 : vector<1x16x256xf32>
    %76 = vector.extract_strided_slice %75 {offsets = [0, 3, 0], sizes = [1, 1, 256], strides = [1, 1, 1]} : vector<1x16x256xf32> to vector<1x1x256xf32>
    %77 = vector.shape_cast %76 : vector<1x1x256xf32> to vector<1x256xf32>
    %c1_i32_28 = arith.constant 1 : i32
    %78 = tpu.dynamic_rotate %77 by %c1_i32_28 dim 1 : vector<1x256xf32>, i32 -> vector<1x256xf32>
    %cst_29 = arith.constant 0.000000e+00 : f32
    %79 = vector.broadcast %cst_29 : f32 to vector<1x256xf32>
    %80 = arith.select %6, %78, %79 : vector<1x256xi1>, vector<1x256xf32>
    %c255_i32_30 = arith.constant 255 : i32
    %81 = tpu.dynamic_rotate %77 by %c255_i32_30 dim 1 : vector<1x256xf32>, i32 -> vector<1x256xf32>
    %cst_31 = arith.constant 0.000000e+00 : f32
    %82 = vector.broadcast %cst_31 : f32 to vector<1x256xf32>
    %83 = arith.select %8, %81, %82 : vector<1x256xi1>, vector<1x256xf32>
    %84 = arith.maximumf %80, %83 : vector<1x256xf32>
    %85 = arith.maximumf %84, %77 : vector<1x256xf32>
    %c16_i32_32 = arith.constant 16 : i32
    %86 = tpu.dynamic_rotate %85 by %c16_i32_32 dim 1 : vector<1x256xf32>, i32 -> vector<1x256xf32>
    %cst_33 = arith.constant 0.000000e+00 : f32
    %87 = vector.broadcast %cst_33 : f32 to vector<1x256xf32>
    %88 = arith.select %10, %86, %87 : vector<1x256xi1>, vector<1x256xf32>
    %c240_i32_34 = arith.constant 240 : i32
    %89 = tpu.dynamic_rotate %85 by %c240_i32_34 dim 1 : vector<1x256xf32>, i32 -> vector<1x256xf32>
    %cst_35 = arith.constant 0.000000e+00 : f32
    %90 = vector.broadcast %cst_35 : f32 to vector<1x256xf32>
    %91 = arith.select %12, %89, %90 : vector<1x256xi1>, vector<1x256xf32>
    %92 = arith.maximumf %88, %91 : vector<1x256xf32>
    %93 = arith.maximumf %92, %85 : vector<1x256xf32>
    %cst_36 = arith.constant 1.000000e-01 : f32
    %94 = vector.broadcast %cst_36 : f32 to vector<1x256xf32>
    %95 = arith.cmpf ogt, %93, %94 : vector<1x256xf32>
    %96 = arith.extui %95 : vector<1x256xi1> to vector<1x256xi32>
    %97 = arith.sitofp %96 : vector<1x256xi32> to vector<1x256xf32>
    %98 = vector.shape_cast %97 : vector<1x256xf32> to vector<1x1x256xf32>
    %99 = vector.broadcast %98 : vector<1x1x256xf32> to vector<1x16x256xf32>
    %100 = arith.mulf %75, %99 : vector<1x16x256xf32>
    %c0_37 = arith.constant 0 : index
    %c0_38 = arith.constant 0 : index
    %c0_39 = arith.constant 0 : index
    %101 = vector.load %arg7[%c0_37, %c0_38, %c0_39] : memref<1x16x256xf32, #tpu.memory_space<vmem>>, vector<1x16x256xf32>
    tpu.vector_store %arg7[%c0_37, %c0_38, %c0_39], %100 {strides = array<i32>} : memref<1x16x256xf32, #tpu.memory_space<vmem>>, vector<1x16x256xf32>,
    return
  }
  func.func @transform_0(%arg0: i32) -> (i32, i32, i32) {
    %c0_i32 = arith.constant 0 : i32
    %c0_i32_0 = arith.constant 0 : i32
    %c0_i32_1 = arith.constant 0 : i32
    return %arg0, %c0_i32, %c0_i32_0 : i32, i32, i32
  }
  func.func @transform_1(%arg0: i32) -> (i32, i32, i32) {
    %c0_i32 = arith.constant 0 : i32
    %c0_i32_0 = arith.constant 0 : i32
    %c0_i32_1 = arith.constant 0 : i32
    return %arg0, %c0_i32, %c0_i32_0 : i32, i32, i32
  }
  func.func @transform_2(%arg0: i32) -> (i32, i32) {
    %c0_i32 = arith.constant 0 : i32
    %c0_i32_0 = arith.constant 0 : i32
    %c0_i32_1 = arith.constant 0 : i32
    return %c0_i32, %c0_i32_0 : i32, i32
  }
  func.func @transform_3(%arg0: i32) -> (i32, i32) {
    %c0_i32 = arith.constant 0 : i32
    %c0_i32_0 = arith.constant 0 : i32
    %c0_i32_1 = arith.constant 0 : i32
    return %c0_i32, %c0_i32_0 : i32, i32
  }
  func.func @transform_4(%arg0: i32) -> (i32, i32) {
    %c0_i32 = arith.constant 0 : i32
    %c0_i32_0 = arith.constant 0 : i32
    %c0_i32_1 = arith.constant 0 : i32
    return %c0_i32, %c0_i32_0 : i32, i32
  }
  func.func @transform_5(%arg0: i32) -> (i32, i32) {
    %c0_i32 = arith.constant 0 : i32
    %c0_i32_0 = arith.constant 0 : i32
    %c0_i32_1 = arith.constant 0 : i32
    return %c0_i32, %c0_i32_0 : i32, i32
  }
  func.func @transform_6(%arg0: i32) -> (i32, i32, i32) {
    %c0_i32 = arith.constant 0 : i32
    %c0_i32_0 = arith.constant 0 : i32
    %c0_i32_1 = arith.constant 0 : i32
    return %arg0, %c0_i32, %c0_i32_0 : i32, i32, i32
  }
}

</mosaic_0001>

<llo_original>
// kernel: tpu_custom_call.1
$region0: #{tpu_custom_call.1}
  #allocation0 [shape = 'u32[]', space=smem, size = 0x4, offset = 0x4, fixed_abs, tag = 'smem constant byte address 0x4 - core index']
  #allocation1 [shape = 'u32[72,128]{1,0:T(1,128)}', space=vmem, size = 0x9000, scoped, tag = 'internal scratch']
  %s0 = inlined_call_operand.vmem [shape: f32[2,16,256], index: 0, kind: input, shape index: {}]
  %s1 = inlined_call_operand.vmem [shape: bf16[2,16,256], index: 1, kind: input, shape index: {}]
  %s2 = inlined_call_operand.vmem [shape: f32[128,48], index: 2, kind: input, shape index: {}]
  %s3 = inlined_call_operand.vmem [shape: f32[128,1], index: 3, kind: input, shape index: {}]
  %s4 = inlined_call_operand.vmem [shape: f32[16,128], index: 4, kind: input, shape index: {}]
  %s5 = inlined_call_operand.vmem [shape: f32[16,1], index: 5, kind: input, shape index: {}]
  %s6 = inlined_call_operand.hbm [shape: f32[2,16,256], index: 6, kind: output, shape index: {}]
  %s7 = sld [smem:[#allocation0]]
  $region57: #{tpu_custom_call.1} parent=0
    _
  %s9 = ssub.s32 1, %s7
  %s10 = scalar_select 0, %s9, %s7
  $region1: #{tpu_custom_call.1} parent=0
    #allocation2 [shape = 'u8[32768]{0}', space=vmem, size = 0x8000, scoped, tag = 'output window, operand 0']
    #allocation3 [shape = 's32[2]{0}', space=sflag, size = 0x8, scoped, tag = 'scoped memory for tpu_custom_call.1']
    %11 = vsyncpa [#allocation3], 0
    %s12 = scalar_lea.sflag [#allocation3], 1
    %13 = vsyncpa %s12, 0
    loop: start=0, step=1, limit=4
    $region2: #{tpu_custom_call.1} parent=1 // loop_pre_header
      _
    $region3: #{tpu_custom_call.1} parent=1 // loop_header
      %s15 = sphi 0, %s19
      %p16 = scmp.ge.s32.totalorder %s15, 4
      %s25 = sphi 0, %s27
      %s28 = sphi 0, %s25
      %s29 = sphi 0, %s28
      %s45 = sphi 0, %s29
      %s51 = sphi 0, %s53
      %s54 = sphi 0, %s51
      %s55 = sphi 0, %s54
      %s71 = sphi 0, %s55
      %s75 = sphi 0, %s75
      %s77 = sphi 0, %s75
      %s78 = sphi 0, %s77
      %s92 = sphi 0, %s78
      %s96 = sphi 0, %s96
      %s98 = sphi 0, %s96
      %s99 = sphi 0, %s98
      %s113 = sphi 0, %s99
      %s117 = sphi 0, %s117
      %s119 = sphi 0, %s117
      %s120 = sphi 0, %s119
      %s134 = sphi 0, %s120
      %s138 = sphi 0, %s138
      %s140 = sphi 0, %s138
      %s141 = sphi 0, %s140
      %s155 = sphi 0, %s141
      %s161 = sphi 0, %s163
      %s164 = sphi 0, %s161
      %s165 = sphi 0, %s164
      %s181 = sphi 0, %s165
    $region4: #{tpu_custom_call.1} parent=1 // loop_header_branch
      %18 = sbr.rel (%p16) target = $region8
    $region5: #{tpu_custom_call.1} parent=1 // loop_body
      %s20 = ssub.s32 %s15, 1
      %s21 = ssub.s32 %s15, 2
      %s22 = sadd.s32 %s15, 1
      %s23 = ssub.s32 %s15, %s22
      %p24 = scmp.eq.s32.totalorder %s23, 0
      %s26 = sadd.s32 %s25, 1
      %s27 = scalar_select %p24, %s25, %s26
      %p30 = pneg %p24
      %p31 = scmp.eq.s32.totalorder %s15, 1
      %p32 = por %p30, %p31
      %p33 = scmp.ne.s32.totalorder %s25, %s28
      %p34 = scmp.eq.s32.totalorder %s15, 0
      %p35 = por %p33, %p34
      %p36 = scmp.ne.s32.totalorder %s25, %s28
      %p37 = scmp.eq.s32.totalorder %s20, 1
      %p38 = por %p36, %p37
      %p39 = scmp.ne.s32.totalorder %s28, %s29
      %p40 = scmp.eq.s32.totalorder %s20, 0
      %p41 = por %p39, %p40
      %p42 = scmp.ne.s32.totalorder %s28, %s29
      %p43 = scmp.eq.s32.totalorder %s21, 1
      %p44 = por %p42, %p43
      %p46 = scmp.ne.s32.totalorder %s29, %s45
      %p47 = scmp.eq.s32.totalorder %s21, 0
      %p48 = por %p46, %p47
      %s49 = ssub.s32 %s15, %s22
      %p50 = scmp.eq.s32.totalorder %s49, 0
      %s52 = sadd.s32 %s51, 1
      %s53 = scalar_select %p50, %s51, %s52
      %p56 = pneg %p50
      %p57 = scmp.eq.s32.totalorder %s15, 1
      %p58 = por %p56, %p57
      %p59 = scmp.ne.s32.totalorder %s51, %s54
      %p60 = scmp.eq.s32.totalorder %s15, 0
      %p61 = por %p59, %p60
      %p62 = scmp.ne.s32.totalorder %s51, %s54
      %p63 = scmp.eq.s32.totalorder %s20, 1
      %p64 = por %p62, %p63
      %p65 = scmp.ne.s32.totalorder %s54, %s55
      %p66 = scmp.eq.s32.totalorder %s20, 0
      %p67 = por %p65, %p66
      %p68 = scmp.ne.s32.totalorder %s54, %s55
      %p69 = scmp.eq.s32.totalorder %s21, 1
      %p70 = por %p68, %p69
      %p72 = scmp.ne.s32.totalorder %s55, %s71
      %p73 = scmp.eq.s32.totalorder %s21, 0
      %p74 = por %p72, %p73
      %s76 = sadd.s32 %s75, 1
      %p79 = scmp.eq.s32.totalorder %s15, 1
      %p80 = scmp.ne.s32.totalorder %s75, %s77
      %p81 = scmp.eq.s32.totalorder %s15, 0
      %p82 = por %p80, %p81
      %p83 = scmp.ne.s32.totalorder %s75, %s77
      %p84 = scmp.eq.s32.totalorder %s20, 1
      %p85 = por %p83, %p84
      %p86 = scmp.ne.s32.totalorder %s77, %s78
      %p87 = scmp.eq.s32.totalorder %s20, 0
      %p88 = por %p86, %p87
      %p89 = scmp.ne.s32.totalorder %s77, %s78
      %p90 = scmp.eq.s32.totalorder %s21, 1
      %p91 = por %p89, %p90
      %p93 = scmp.ne.s32.totalorder %s78, %s92
      %p94 = scmp.eq.s32.totalorder %s21, 0
      %p95 = por %p93, %p94
      %s97 = sadd.s32 %s96, 1
      %p100 = scmp.eq.s32.totalorder %s15, 1
      %p101 = scmp.ne.s32.totalorder %s96, %s98
      %p102 = scmp.eq.s32.totalorder %s15, 0
      %p103 = por %p101, %p102
      %p104 = scmp.ne.s32.totalorder %s96, %s98
      %p105 = scmp.eq.s32.totalorder %s20, 1
      %p106 = por %p104, %p105
      %p107 = scmp.ne.s32.totalorder %s98, %s99
      %p108 = scmp.eq.s32.totalorder %s20, 0
      %p109 = por %p107, %p108
      %p110 = scmp.ne.s32.totalorder %s98, %s99
      %p111 = scmp.eq.s32.totalorder %s21, 1
      %p112 = por %p110, %p111
      %p114 = scmp.ne.s32.totalorder %s99, %s113
      %p115 = scmp.eq.s32.totalorder %s21, 0
      %p116 = por %p114, %p115
      %s118 = sadd.s32 %s117, 1
      %p121 = scmp.eq.s32.totalorder %s15, 1
      %p122 = scmp.ne.s32.totalorder %s117, %s119
      %p123 = scmp.eq.s32.totalorder %s15, 0
      %p124 = por %p122, %p123
      %p125 = scmp.ne.s32.totalorder %s117, %s119
      %p126 = scmp.eq.s32.totalorder %s20, 1
      %p127 = por %p125, %p126
      %p128 = scmp.ne.s32.totalorder %s119, %s120
      %p129 = scmp.eq.s32.totalorder %s20, 0
      %p130 = por %p128, %p129
      %p131 = scmp.ne.s32.totalorder %s119, %s120
      %p132 = scmp.eq.s32.totalorder %s21, 1
      %p133 = por %p131, %p132
      %p135 = scmp.ne.s32.totalorder %s120, %s134
      %p136 = scmp.eq.s32.totalorder %s21, 0
      %p137 = por %p135, %p136
      %s139 = sadd.s32 %s138, 1
      %p142 = scmp.eq.s32.totalorder %s15, 1
      %p143 = scmp.ne.s32.totalorder %s138, %s140
      %p144 = scmp.eq.s32.totalorder %s15, 0
      %p145 = por %p143, %p144
      %p146 = scmp.ne.s32.totalorder %s138, %s140
      %p147 = scmp.eq.s32.totalorder %s20, 1
      %p148 = por %p146, %p147
      %p149 = scmp.ne.s32.totalorder %s140, %s141
      %p150 = scmp.eq.s32.totalorder %s20, 0
      %p151 = por %p149, %p150
      %p152 = scmp.ne.s32.totalorder %s140, %s141
      %p153 = scmp.eq.s32.totalorder %s21, 1
      %p154 = por %p152, %p153
      %p156 = scmp.ne.s32.totalorder %s141, %s155
      %p157 = scmp.eq.s32.totalorder %s21, 0
      %p158 = por %p156, %p157
      %s159 = ssub.s32 %s15, %s22
      %p160 = scmp.eq.s32.totalorder %s159, 0
      %s162 = sadd.s32 %s161, 1
      %s163 = scalar_select %p160, %s161, %s162
      %p166 = pneg %p160
      %p167 = scmp.eq.s32.totalorder %s15, 1
      %p168 = por %p166, %p167
      %p169 = scmp.ne.s32.totalorder %s161, %s164
      %p170 = scmp.eq.s32.totalorder %s15, 0
      %p171 = por %p169, %p170
      %p172 = scmp.ne.s32.totalorder %s161, %s164
      %p173 = scmp.eq.s32.totalorder %s20, 1
      %p174 = por %p172, %p173
      %p175 = scmp.ne.s32.totalorder %s164, %s165
      %p176 = scmp.eq.s32.totalorder %s20, 0
      %p177 = por %p175, %p176
      %p178 = scmp.ne.s32.totalorder %s164, %s165
      %p179 = scmp.eq.s32.totalorder %s21, 1
      %p180 = por %p178, %p179
      %p182 = scmp.ne.s32.totalorder %s165, %s181
      %p183 = scmp.eq.s32.totalorder %s21, 0
      %p184 = por %p182, %p183
      %p185 = scmp.le.s32.totalorder 1, %s15
      %p186 = scmp.lt.s32.totalorder %s15, 3
      %p187 = pnand %p185, %p186
      %p188 = pneg %p187
      // Predicated region
      $region9: #{tpu_custom_call.1} parent=5 // pred_check
        _
      $region10: #{tpu_custom_call.1} parent=5 // pred_check_branch
        %190 = sbr.rel (%p187) target = $region12
      $region11: #{tpu_custom_call.1} parent=5 // pred_region
        %s191 = ssub.s32 %s15, 1
        // Predicated region
        $region13: #{tpu_custom_call.1} parent=11 // pred_check
          %p192 = pneg %p88
        $region14: #{tpu_custom_call.1} parent=11 // pred_check_branch
          %194 = sbr.rel (%p192) target = $region16
        $region15: #{tpu_custom_call.1} parent=11 // pred_region
          _
        $region16: #{tpu_custom_call.1} parent=11 // pred_fallthru
          _
        // Predicated region
        $region17: #{tpu_custom_call.1} parent=11 // pred_check
          %p195 = pneg %p109
        $region18: #{tpu_custom_call.1} parent=11 // pred_check_branch
          %197 = sbr.rel (%p195) target = $region20
        $region19: #{tpu_custom_call.1} parent=11 // pred_region
          _
        $region20: #{tpu_custom_call.1} parent=11 // pred_fallthru
          _
        // Predicated region
        $region21: #{tpu_custom_call.1} parent=11 // pred_check
          %p198 = pneg %p130
        $region22: #{tpu_custom_call.1} parent=11 // pred_check_branch
          %200 = sbr.rel (%p198) target = $region24
        $region23: #{tpu_custom_call.1} parent=11 // pred_region
          _
        $region24: #{tpu_custom_call.1} parent=11 // pred_fallthru
          _
        // Predicated region
        $region25: #{tpu_custom_call.1} parent=11 // pred_check
          %p201 = pneg %p151
        $region26: #{tpu_custom_call.1} parent=11 // pred_check_branch
          %203 = sbr.rel (%p201) target = $region28
        $region27: #{tpu_custom_call.1} parent=11 // pred_region
          _
        $region28: #{tpu_custom_call.1} parent=11 // pred_fallthru
          _
      $region12: #{tpu_custom_call.1} parent=5 // pred_fallthru
        _
      %p204 = scmp.lt.s32.totalorder %s15, 2
      // Predicated region
      $region29: #{tpu_custom_call.1} parent=5 // pred_check
        %p205 = pneg %p204
      $region30: #{tpu_custom_call.1} parent=5 // pred_check_branch
        %207 = sbr.rel (%p205) target = $region32
      $region31: #{tpu_custom_call.1} parent=5 // pred_region
        // Predicated region
        $region33: #{tpu_custom_call.1} parent=31 // pred_check
          %p208 = pneg %p35
        $region34: #{tpu_custom_call.1} parent=31 // pred_check_branch
          %210 = sbr.rel (%p208) target = $region36
        $region35: #{tpu_custom_call.1} parent=31 // pred_region
          %p211 = scmp.lt.s32.totalorder %s15, 1
          %s212 = scalar_select %p211, %s15, 1
          %s213 = smul.addr %s212, 4
          %s214 = smul.addr %s213, 8
          %s215 = scalar_lea.vmem %s0, %s214
        $region36: #{tpu_custom_call.1} parent=31 // pred_fallthru
          _
        // Predicated region
        $region37: #{tpu_custom_call.1} parent=31 // pred_check
          %p216 = pneg %p61
        $region38: #{tpu_custom_call.1} parent=31 // pred_check_branch
          %218 = sbr.rel (%p216) target = $region40
        $region39: #{tpu_custom_call.1} parent=31 // pred_region
          %p219 = scmp.lt.s32.totalorder %s15, 1
          %s220 = scalar_select %p219, %s15, 1
          %s221 = smul.addr %s220, 4
          %s222 = smul.addr %s221, 4
          %s223 = scalar_lea.vmem %s1, %s222
        $region40: #{tpu_custom_call.1} parent=31 // pred_fallthru
          _
      $region32: #{tpu_custom_call.1} parent=5 // pred_fallthru
        _
      %p224 = scmp.le.s32.totalorder 1, %s15
      %p225 = scmp.lt.s32.totalorder %s15, 3
      %p226 = pnand %p224, %p225
      %p227 = pneg %p226
      // Predicated region
      $region41: #{tpu_custom_call.1} parent=5 // pred_check
        _
      $region42: #{tpu_custom_call.1} parent=5 // pred_check_branch
        %229 = sbr.rel (%p226) target = $region44
      $region43: #{tpu_custom_call.1} parent=5 // pred_region
        %s230 = ssub.s32 %s15, 1
        %p231 = scmp.lt.s32.totalorder %s20, 1
        %s232 = scalar_select %p231, %s20, 1
        %s233 = smul.addr %s232, 4
        %s234 = smul.addr %s233, 8
        %s235 = scalar_lea.vmem %s0, %s234
        %p236 = pneg %p41
        %p237 = pneg %p38
        %p238 = scmp.lt.s32.totalorder %s20, 1
        %s239 = scalar_select %p238, %s20, 1
        %s240 = smul.addr %s239, 4
        %s241 = smul.addr %s240, 4
        %s242 = scalar_lea.vmem %s1, %s241
        %p243 = pneg %p67
        %p244 = pneg %p64
        %p245 = pneg %p88
        %p246 = pneg %p85
        %p247 = pneg %p109
        %p248 = pneg %p106
        %p249 = pneg %p130
        %p250 = pneg %p127
        %p251 = pneg %p151
        %p252 = pneg %p148
        %p253 = pneg %p177
        %p254 = pneg %p174
        %s255 = sand.u32 %s164, 1
        %s256 = scalar_lea.sflag [#allocation3], %s255
        %s257 = sand.u32 %s164, 1
        %s258 = smul.addr %s257, 32
        %s259 = scalar_lea.vmem [#allocation2], %s258
        %p260 = scmp.lt.s32.totalorder %s20, 1
        %s261 = scalar_select %p260, %s20, 1
        %s262 = smul.addr %s261, 4
        %s263 = smul.addr %s262, 8
        %s264 = scalar_lea.vmem %s0, %s263
        %p265 = scmp.lt.s32.totalorder %s20, 1
        %s266 = scalar_select %p265, %s20, 1
        %s267 = smul.addr %s266, 4
        %s268 = smul.addr %s267, 4
        %s269 = scalar_lea.vmem %s1, %s268
        %v270 = vld [vmem:[%s264] sm:$0xff]
        %v271 = vld [vmem:[%s264 + $0x8] sm:$0xff]
        %v272 = vld [vmem:[%s264 + $0x10] sm:$0xff]
        %v273 = vld [vmem:[%s264 + $0x18] sm:$0xff]
        %v274 = vlaneseq
        %v275 = vand.u32 %v274, 127
        %v276 = vadd.s32 %v275, 128
        %v277 = vand.u32 %v275, 15
        %v278 = vand.u32 %v276, 15
        %vm279 = vcmp.ge.s32.totalorder %v277, 1
        %vm280 = vcmp.ge.s32.totalorder %v278, 1
        %vm281 = vcmp.le.s32.totalorder %v277, 14
        %vm282 = vcmp.le.s32.totalorder %v278, 14
        %vm283 = vcmp.ge.s32.totalorder %v275, 16
        %vm284 = vcmp.ge.s32.totalorder %v276, 16
        %vm285 = vcmp.lt.s32.totalorder %v275, 240
        %vm286 = vcmp.lt.s32.totalorder %v276, 240
        %287 = vrot.lane.b32.xlu0 %v270, 1
        %v288 = vpop.permute.xlu0 %287
        %289 = vrot.lane.b32.xlu0 %v272, 1
        %v290 = vpop.permute.xlu0 %289
        %291 = vrot.lane.b32.xlu0 %v271, 1
        %v292 = vpop.permute.xlu0 %291
        %293 = vrot.lane.b32.xlu0 %v273, 1
        %v294 = vpop.permute.xlu0 %293
        %vm295 = vcmp.lt.s32.totalorder %v275, 1
        %v296 = vsel %vm295, %v288, %v292
        %v297 = vsel %vm295, %v290, %v294
        %v298 = vsel %vm295, %v292, %v288
        %v299 = vsel %vm295, %v294, %v290
        %v300 = vsel %vm279, 1, 0
        %v301 = vsel %vm280, 1, 0
        %vm302 = vcmp.eq.s32.totalorder %v300, 1
        %vm303 = vcmp.eq.s32.totalorder %v301, 1
        %v304 = vsel %vm302, %v298, 0.0
        %v305 = vsel %vm303, %v296, 0.0
        %v306 = vsel %vm302, %v299, 0.0
        %v307 = vsel %vm303, %v297, 0.0
        %308 = vrot.lane.b32.xlu0 %v270, 127
        %v309 = vpop.permute.xlu0 %308
        %310 = vrot.lane.b32.xlu0 %v272, 127
        %v311 = vpop.permute.xlu0 %310
        %312 = vrot.lane.b32.xlu0 %v271, 127
        %v313 = vpop.permute.xlu0 %312
        %314 = vrot.lane.b32.xlu0 %v273, 127
        %v315 = vpop.permute.xlu0 %314
        %vm316 = vcmp.lt.s32.totalorder %v275, 127
        %v317 = vsel %vm316, %v309, %v313
        %v318 = vsel %vm316, %v311, %v315
        %v319 = vsel %vm316, %v313, %v309
        %v320 = vsel %vm316, %v315, %v311
        %v321 = vsel %vm281, 1, 0
        %v322 = vsel %vm282, 1, 0
        %vm323 = vcmp.eq.s32.totalorder %v321, 1
        %vm324 = vcmp.eq.s32.totalorder %v322, 1
        %v325 = vsel %vm323, %v317, 0.0
        %v326 = vsel %vm324, %v319, 0.0
        %v327 = vsel %vm323, %v318, 0.0
        %v328 = vsel %vm324, %v320, 0.0
        %v329 = vsub.f32 %v325, %v304
        %v330 = vsub.f32 %v326, %v305
        %v331 = vsub.f32 %v327, %v306
        %v332 = vsub.f32 %v328, %v307
        %v333 = vmul.f32 %v270, 2.0
        %v334 = vmul.f32 %v271, 2.0
        %v335 = vmul.f32 %v272, 2.0
        %v336 = vmul.f32 %v273, 2.0
        %v337 = vadd.f32 %v304, %v333
        %v338 = vadd.f32 %v305, %v334
        %v339 = vadd.f32 %v306, %v335
        %v340 = vadd.f32 %v307, %v336
        %v341 = vadd.f32 %v337, %v325
        %v342 = vadd.f32 %v338, %v326
        %v343 = vadd.f32 %v339, %v327
        %v344 = vadd.f32 %v340, %v328
        %345 = vrot.lane.b32.xlu0 %v329, 16
        %v346 = vpop.permute.xlu0 %345
        %347 = vrot.lane.b32.xlu0 %v331, 16
        %v348 = vpop.permute.xlu0 %347
        %349 = vrot.lane.b32.xlu0 %v330, 16
        %v350 = vpop.permute.xlu0 %349
        %351 = vrot.lane.b32.xlu0 %v332, 16
        %v352 = vpop.permute.xlu0 %351
        %vm353 = vcmp.lt.s32.totalorder %v275, 16
        %v354 = vsel %vm353, %v346, %v350
        %v355 = vsel %vm353, %v348, %v352
        %v356 = vsel %vm353, %v350, %v346
        %v357 = vsel %vm353, %v352, %v348
        %v358 = vsel %vm283, 1, 0
        %v359 = vsel %vm284, 1, 0
        %vm360 = vcmp.eq.s32.totalorder %v358, 1
        %vm361 = vcmp.eq.s32.totalorder %v359, 1
        %v362 = vsel %vm360, %v356, 0.0
        %v363 = vsel %vm361, %v354, 0.0
        %v364 = vsel %vm360, %v357, 0.0
        %v365 = vsel %vm361, %v355, 0.0
        %v366 = vmul.f32 %v329, 2.0
        %v367 = vmul.f32 %v330, 2.0
        %v368 = vmul.f32 %v331, 2.0
        %v369 = vmul.f32 %v332, 2.0
        %v370 = vadd.f32 %v362, %v366
        %v371 = vadd.f32 %v363, %v367
        %v372 = vadd.f32 %v364, %v368
        %v373 = vadd.f32 %v365, %v369
        %374 = vrot.lane.b32.xlu0 %v329, 112
        %v375 = vpop.permute.xlu0 %374
        %376 = vrot.lane.b32.xlu0 %v331, 112
        %v377 = vpop.permute.xlu0 %376
        %378 = vrot.lane.b32.xlu0 %v330, 112
        %v379 = vpop.permute.xlu0 %378
        %380 = vrot.lane.b32.xlu0 %v332, 112
        %v381 = vpop.permute.xlu0 %380
        %vm382 = vcmp.lt.s32.totalorder %v275, 112
        %v383 = vsel %vm382, %v375, %v379
        %v384 = vsel %vm382, %v377, %v381
        %v385 = vsel %vm382, %v379, %v375
        %v386 = vsel %vm382, %v381, %v377
        %v387 = vsel %vm285, 1, 0
        %v388 = vsel %vm286, 1, 0
        %vm389 = vcmp.eq.s32.totalorder %v387, 1
        %vm390 = vcmp.eq.s32.totalorder %v388, 1
        %v391 = vsel %vm389, %v383, 0.0
        %v392 = vsel %vm390, %v385, 0.0
        %v393 = vsel %vm389, %v384, 0.0
        %v394 = vsel %vm390, %v386, 0.0
        %v395 = vadd.f32 %v370, %v391
        %v396 = vadd.f32 %v371, %v392
        %v397 = vadd.f32 %v372, %v393
        %v398 = vadd.f32 %v373, %v394
        %399 = vrot.lane.b32.xlu0 %v341, 112
        %v400 = vpop.permute.xlu0 %399
        %401 = vrot.lane.b32.xlu0 %v343, 112
        %v402 = vpop.permute.xlu0 %401
        %403 = vrot.lane.b32.xlu0 %v342, 112
        %v404 = vpop.permute.xlu0 %403
        %405 = vrot.lane.b32.xlu0 %v344, 112
        %v406 = vpop.permute.xlu0 %405
        %v407 = vsel %vm382, %v400, %v404
        %v408 = vsel %vm382, %v402, %v406
        %v409 = vsel %vm382, %v404, %v400
        %v410 = vsel %vm382, %v406, %v402
        %v411 = vsel %vm389, %v407, 0.0
        %v412 = vsel %vm390, %v409, 0.0
        %v413 = vsel %vm389, %v408, 0.0
        %v414 = vsel %vm390, %v410, 0.0
        %415 = vrot.lane.b32.xlu0 %v341, 16
        %v416 = vpop.permute.xlu0 %415
        %417 = vrot.lane.b32.xlu0 %v343, 16
        %v418 = vpop.permute.xlu0 %417
        %419 = vrot.lane.b32.xlu0 %v342, 16
        %v420 = vpop.permute.xlu0 %419
        %421 = vrot.lane.b32.xlu0 %v344, 16
        %v422 = vpop.permute.xlu0 %421
        %v423 = vsel %vm353, %v416, %v420
        %v424 = vsel %vm353, %v418, %v422
        %v425 = vsel %vm353, %v420, %v416
        %v426 = vsel %vm353, %v422, %v418
        %v427 = vsel %vm360, %v425, 0.0
        %v428 = vsel %vm361, %v423, 0.0
        %v429 = vsel %vm360, %v426, 0.0
        %v430 = vsel %vm361, %v424, 0.0
        %v431 = vsub.f32 %v411, %v427
        %v432 = vsub.f32 %v412, %v428
        %v433 = vsub.f32 %v413, %v429
        %v434 = vsub.f32 %v414, %v430
        %v435 = vld [vmem:[%s2] sm:$0xff]
        %v436 = vld [vmem:[%s2 + $0x8] sm:$0xff]
        %v437 = vld [vmem:[%s2 + $0x10] sm:$0xff]
        %v438 = vld [vmem:[%s2 + $0x18] sm:$0xff]
        %v439 = vld [vmem:[%s2 + $0x20] sm:$0xff]
        %v440 = vld [vmem:[%s2 + $0x28] sm:$0xff]
        %v441 = vld [vmem:[%s2 + $0x30] sm:$0xff]
        %v442 = vld [vmem:[%s2 + $0x38] sm:$0xff]
        %v443 = vld [vmem:[%s2 + $0x40] sm:$0xff]
        %v444 = vld [vmem:[%s2 + $0x48] sm:$0xff]
        %v445 = vld [vmem:[%s2 + $0x50] sm:$0xff]
        %v446 = vld [vmem:[%s2 + $0x58] sm:$0xff]
        %v447 = vld [vmem:[%s2 + $0x60] sm:$0xff]
        %v448 = vld [vmem:[%s2 + $0x68] sm:$0xff]
        %v449 = vld [vmem:[%s2 + $0x70] sm:$0xff]
        %v450 = vld [vmem:[%s2 + $0x78] sm:$0xff]
        %v451 = vld [vmem:[%s3] sm:$0xff]
        %v452 = vld [vmem:[%s3 + $0x8] sm:$0xff]
        %v453 = vld [vmem:[%s3 + $0x10] sm:$0xff]
        %v454 = vld [vmem:[%s3 + $0x18] sm:$0xff]
        %v455 = vld [vmem:[%s3 + $0x20] sm:$0xff]
        %v456 = vld [vmem:[%s3 + $0x28] sm:$0xff]
        %v457 = vld [vmem:[%s3 + $0x30] sm:$0xff]
        %v458 = vld [vmem:[%s3 + $0x38] sm:$0xff]
        %v459 = vld [vmem:[%s3 + $0x40] sm:$0xff]
        %v460 = vld [vmem:[%s3 + $0x48] sm:$0xff]
        %v461 = vld [vmem:[%s3 + $0x50] sm:$0xff]
        %v462 = vld [vmem:[%s3 + $0x58] sm:$0xff]
        %v463 = vld [vmem:[%s3 + $0x60] sm:$0xff]
        %v464 = vld [vmem:[%s3 + $0x68] sm:$0xff]
        %v465 = vld [vmem:[%s3 + $0x70] sm:$0xff]
        %v466 = vld [vmem:[%s3 + $0x78] sm:$0xff]
        %468 = vset.pattern.permute.xlu0 0
        %469 = vperm.xlu0 %468, %v451
        %v470 = vpop.permute.xlu0 %469
        %473 = vset.pattern.permute.xlu0 0
        %474 = vperm.xlu0 %473, %v452
        %v475 = vpop.permute.xlu0 %474
        %478 = vset.pattern.permute.xlu0 0
        %479 = vperm.xlu0 %478, %v453
        %v480 = vpop.permute.xlu0 %479
        %483 = vset.pattern.permute.xlu0 0
        %484 = vperm.xlu0 %483, %v454
        %v485 = vpop.permute.xlu0 %484
        %488 = vset.pattern.permute.xlu0 0
        %489 = vperm.xlu0 %488, %v455
        %v490 = vpop.permute.xlu0 %489
        %493 = vset.pattern.permute.xlu0 0
        %494 = vperm.xlu0 %493, %v456
        %v495 = vpop.permute.xlu0 %494
        %498 = vset.pattern.permute.xlu0 0
        %499 = vperm.xlu0 %498, %v457
        %v500 = vpop.permute.xlu0 %499
        %503 = vset.pattern.permute.xlu0 0
        %504 = vperm.xlu0 %503, %v458
        %v505 = vpop.permute.xlu0 %504
        %508 = vset.pattern.permute.xlu0 0
        %509 = vperm.xlu0 %508, %v459
        %v510 = vpop.permute.xlu0 %509
        %513 = vset.pattern.permute.xlu0 0
        %514 = vperm.xlu0 %513, %v460
        %v515 = vpop.permute.xlu0 %514
        %518 = vset.pattern.permute.xlu0 0
        %519 = vperm.xlu0 %518, %v461
        %v520 = vpop.permute.xlu0 %519
        %523 = vset.pattern.permute.xlu0 0
        %524 = vperm.xlu0 %523, %v462
        %v525 = vpop.permute.xlu0 %524
        %528 = vset.pattern.permute.xlu0 0
        %529 = vperm.xlu0 %528, %v463
        %v530 = vpop.permute.xlu0 %529
        %533 = vset.pattern.permute.xlu0 0
        %534 = vperm.xlu0 %533, %v464
        %v535 = vpop.permute.xlu0 %534
        %538 = vset.pattern.permute.xlu0 0
        %539 = vperm.xlu0 %538, %v465
        %v540 = vpop.permute.xlu0 %539
        %543 = vset.pattern.permute.xlu0 0
        %544 = vperm.xlu0 %543, %v466
        %v545 = vpop.permute.xlu0 %544
        %vm547 = vcmask 392192
        %v549 = vsel %vm547, %v435, 0
        %v552 = vsel %vm547, %v436, 0
        %v555 = vsel %vm547, %v437, 0
        %v558 = vsel %vm547, %v438, 0
        %v561 = vsel %vm547, %v439, 0
        %v564 = vsel %vm547, %v440, 0
        %v567 = vsel %vm547, %v441, 0
        %v570 = vsel %vm547, %v442, 0
        %v573 = vsel %vm547, %v443, 0
        %v576 = vsel %vm547, %v444, 0
        %v579 = vsel %vm547, %v445, 0
        %v582 = vsel %vm547, %v446, 0
        %v585 = vsel %vm547, %v447, 0
        %v588 = vsel %vm547, %v448, 0
        %v591 = vsel %vm547, %v449, 0
        %v594 = vsel %vm547, %v450, 0
        %596 = vmatpush.msra.mxu0 0.0
        %597 = vmatpush.msra.mxu0 0.0
        %598 = vmatpush.msra.mxu0 0.0
        %599 = vmatpush.msra.mxu0 0.0
        %600 = vmatpush.msra.mxu0 0.0
        %601 = vmatpush.msra.mxu0 0.0
        %602 = vmatpush.msra.mxu0 0.0
        %603 = vmatpush.msra.mxu0 0.0
        %604 = vmatpush.msra.mxu0 0.0
        %605 = vmatpush.msra.mxu0 0.0
        %606 = vmatpush.msra.mxu0 %v272
        %607 = vmatpush.msra.mxu0 %v270
        %608 = vmatpush.msra.mxu0 %v433
        %609 = vmatpush.msra.mxu0 %v431
        %610 = vmatpush.msra.mxu0 %v397
        %611 = vmatpush.msra.mxu0 %v395
        %612 = vmatmul.f32.gmra.mxu0 %v549
        %v613 = vpop.f32.mrf.mxu0
        %v614 = vadd.f32 %v470, %v613
        %615 = vmatmul.f32.gmra.mxu0 %v552
        %v616 = vpop.f32.mrf.mxu0
        %v617 = vadd.f32 %v475, %v616
        %618 = vmatmul.f32.gmra.mxu0 %v555
        %v619 = vpop.f32.mrf.mxu0
        %v620 = vadd.f32 %v480, %v619
        %621 = vmatmul.f32.gmra.mxu0 %v558
        %v622 = vpop.f32.mrf.mxu0
        %v623 = vadd.f32 %v485, %v622
        %624 = vmatmul.f32.gmra.mxu0 %v561
        %v625 = vpop.f32.mrf.mxu0
        %v626 = vadd.f32 %v490, %v625
        %627 = vmatmul.f32.gmra.mxu0 %v564
        %v628 = vpop.f32.mrf.mxu0
        %v629 = vadd.f32 %v495, %v628
        %630 = vmatmul.f32.gmra.mxu0 %v567
        %v631 = vpop.f32.mrf.mxu0
        %v632 = vadd.f32 %v500, %v631
        %633 = vmatmul.f32.gmra.mxu0 %v570
        %v634 = vpop.f32.mrf.mxu0
        %v635 = vadd.f32 %v505, %v634
        %636 = vmatmul.f32.gmra.mxu0 %v573
        %v637 = vpop.f32.mrf.mxu0
        %v638 = vadd.f32 %v510, %v637
        %639 = vmatmul.f32.gmra.mxu0 %v576
        %v640 = vpop.f32.mrf.mxu0
        %v641 = vadd.f32 %v515, %v640
        %642 = vmatmul.f32.gmra.mxu0 %v579
        %v643 = vpop.f32.mrf.mxu0
        %v644 = vadd.f32 %v520, %v643
        %645 = vmatmul.f32.gmra.mxu0 %v582
        %v646 = vpop.f32.mrf.mxu0
        %v647 = vadd.f32 %v525, %v646
        %648 = vmatmul.f32.gmra.mxu0 %v585
        %v649 = vpop.f32.mrf.mxu0
        %v650 = vadd.f32 %v530, %v649
        %651 = vmatmul.f32.gmra.mxu0 %v588
        %v652 = vpop.f32.mrf.mxu0
        %v653 = vadd.f32 %v535, %v652
        %654 = vmatmul.f32.gmra.mxu0 %v591
        %v655 = vpop.f32.mrf.mxu0
        %v656 = vadd.f32 %v540, %v655
        %657 = vmatmul.f32.gmra.mxu0 %v594
        %v658 = vpop.f32.mrf.mxu0
        %v659 = vadd.f32 %v545, %v658
        %660 = vdwg.mxu0
        %661 = vmatpush.msra.mxu0 0.0
        %662 = vmatpush.msra.mxu0 0.0
        %663 = vmatpush.msra.mxu0 0.0
        %664 = vmatpush.msra.mxu0 0.0
        %665 = vmatpush.msra.mxu0 0.0
        %666 = vmatpush.msra.mxu0 0.0
        %667 = vmatpush.msra.mxu0 0.0
        %668 = vmatpush.msra.mxu0 0.0
        %669 = vmatpush.msra.mxu0 0.0
        %670 = vmatpush.msra.mxu0 0.0
        %671 = vmatpush.msra.mxu0 %v273
        %672 = vmatpush.msra.mxu0 %v271
        %673 = vmatpush.msra.mxu0 %v434
        %674 = vmatpush.msra.mxu0 %v432
        %675 = vmatpush.msra.mxu0 %v398
        %676 = vmatpush.msra.mxu0 %v396
        %677 = vmatmul.f32.gmra.mxu0 %v549
        %v678 = vpop.f32.mrf.mxu0
        %v679 = vadd.f32 %v470, %v678
        %680 = vmatmul.f32.gmra.mxu0 %v552
        %v681 = vpop.f32.mrf.mxu0
        %v682 = vadd.f32 %v475, %v681
        %683 = vmatmul.f32.gmra.mxu0 %v555
        %v684 = vpop.f32.mrf.mxu0
        %v685 = vadd.f32 %v480, %v684
        %686 = vmatmul.f32.gmra.mxu0 %v558
        %v687 = vpop.f32.mrf.mxu0
        %v688 = vadd.f32 %v485, %v687
        %689 = vmatmul.f32.gmra.mxu0 %v561
        %v690 = vpop.f32.mrf.mxu0
        %v691 = vadd.f32 %v490, %v690
        %692 = vmatmul.f32.gmra.mxu0 %v564
        %v693 = vpop.f32.mrf.mxu0
        %v694 = vadd.f32 %v495, %v693
        %695 = vmatmul.f32.gmra.mxu0 %v567
        %v696 = vpop.f32.mrf.mxu0
        %v697 = vadd.f32 %v500, %v696
        %698 = vmatmul.f32.gmra.mxu0 %v570
        %v699 = vpop.f32.mrf.mxu0
        %v700 = vadd.f32 %v505, %v699
        %701 = vmatmul.f32.gmra.mxu0 %v573
        %v702 = vpop.f32.mrf.mxu0
        %v703 = vadd.f32 %v510, %v702
        %704 = vmatmul.f32.gmra.mxu0 %v576
        %v705 = vpop.f32.mrf.mxu0
        %v706 = vadd.f32 %v515, %v705
        %707 = vmatmul.f32.gmra.mxu0 %v579
        %v708 = vpop.f32.mrf.mxu0
        %v709 = vadd.f32 %v520, %v708
        %710 = vmatmul.f32.gmra.mxu0 %v582
        %v711 = vpop.f32.mrf.mxu0
        %v712 = vadd.f32 %v525, %v711
        %713 = vmatmul.f32.gmra.mxu0 %v585
        %v714 = vpop.f32.mrf.mxu0
        %v715 = vadd.f32 %v530, %v714
        %716 = vmatmul.f32.gmra.mxu0 %v588
        %v717 = vpop.f32.mrf.mxu0
        %v718 = vadd.f32 %v535, %v717
        %719 = vmatmul.f32.gmra.mxu0 %v591
        %v720 = vpop.f32.mrf.mxu0
        %v721 = vadd.f32 %v540, %v720
        %722 = vmatmul.f32.gmra.mxu0 %v594
        %v723 = vpop.f32.mrf.mxu0
        %v724 = vadd.f32 %v545, %v723
        %725 = vdwg.mxu0
        %v726 = vmax.f32 %v614, 0.0
        %v727 = vmax.f32 %v679, 0.0
        %v728 = vmax.f32 %v617, 0.0
        %v729 = vmax.f32 %v682, 0.0
        %v730 = vmax.f32 %v620, 0.0
        %v731 = vmax.f32 %v685, 0.0
        %v732 = vmax.f32 %v623, 0.0
        %v733 = vmax.f32 %v688, 0.0
        %v734 = vmax.f32 %v626, 0.0
        %v735 = vmax.f32 %v691, 0.0
        %v736 = vmax.f32 %v629, 0.0
        %v737 = vmax.f32 %v694, 0.0
        %v738 = vmax.f32 %v632, 0.0
        %v739 = vmax.f32 %v697, 0.0
        %v740 = vmax.f32 %v635, 0.0
        %v741 = vmax.f32 %v700, 0.0
        %v742 = vmax.f32 %v638, 0.0
        %v743 = vmax.f32 %v703, 0.0
        %v744 = vmax.f32 %v641, 0.0
        %v745 = vmax.f32 %v706, 0.0
        %v746 = vmax.f32 %v644, 0.0
        %v747 = vmax.f32 %v709, 0.0
        %v748 = vmax.f32 %v647, 0.0
        %v749 = vmax.f32 %v712, 0.0
        %v750 = vmax.f32 %v650, 0.0
        %v751 = vmax.f32 %v715, 0.0
        %v752 = vmax.f32 %v653, 0.0
        %v753 = vmax.f32 %v718, 0.0
        %v754 = vmax.f32 %v656, 0.0
        %v755 = vmax.f32 %v721, 0.0
        %v756 = vmax.f32 %v659, 0.0
        %v757 = vmax.f32 %v724, 0.0
        %v758 = vld [vmem:[%s4] sm:$0xff]
        %v759 = vld [vmem:[%s4 + $0x8] sm:$0xff]
        %v760 = vld [vmem:[%s5] sm:$0xff]
        %v761 = vld [vmem:[%s5 + $0x8] sm:$0xff]
        %763 = vset.pattern.permute.xlu0 0
        %764 = vperm.xlu0 %763, %v760
        %v765 = vpop.permute.xlu0 %764
        %768 = vset.pattern.permute.xlu0 0
        %769 = vperm.xlu0 %768, %v761
        %v770 = vpop.permute.xlu0 %769
        %772 = vmatpush.msra.mxu0 %v756
        %773 = vmatpush.msra.mxu0 %v754
        %774 = vmatpush.msra.mxu0 %v752
        %775 = vmatpush.msra.mxu0 %v750
        %776 = vmatpush.msra.mxu0 %v748
        %777 = vmatpush.msra.mxu0 %v746
        %778 = vmatpush.msra.mxu0 %v744
        %779 = vmatpush.msra.mxu0 %v742
        %780 = vmatpush.msra.mxu0 %v740
        %781 = vmatpush.msra.mxu0 %v738
        %782 = vmatpush.msra.mxu0 %v736
        %783 = vmatpush.msra.mxu0 %v734
        %784 = vmatpush.msra.mxu0 %v732
        %785 = vmatpush.msra.mxu0 %v730
        %786 = vmatpush.msra.mxu0 %v728
        %787 = vmatpush.msra.mxu0 %v726
        %788 = vmatmul.f32.gmra.mxu0 %v758
        %v789 = vpop.f32.mrf.mxu0
        %v790 = vadd.f32 %v765, %v789
        %791 = vmatmul.f32.gmra.mxu0 %v759
        %v792 = vpop.f32.mrf.mxu0
        %v793 = vadd.f32 %v770, %v792
        %794 = vdwg.mxu0
        %795 = vmatpush.msra.mxu0 %v757
        %796 = vmatpush.msra.mxu0 %v755
        %797 = vmatpush.msra.mxu0 %v753
        %798 = vmatpush.msra.mxu0 %v751
        %799 = vmatpush.msra.mxu0 %v749
        %800 = vmatpush.msra.mxu0 %v747
        %801 = vmatpush.msra.mxu0 %v745
        %802 = vmatpush.msra.mxu0 %v743
        %803 = vmatpush.msra.mxu0 %v741
        %804 = vmatpush.msra.mxu0 %v739
        %805 = vmatpush.msra.mxu0 %v737
        %806 = vmatpush.msra.mxu0 %v735
        %807 = vmatpush.msra.mxu0 %v733
        %808 = vmatpush.msra.mxu0 %v731
        %809 = vmatpush.msra.mxu0 %v729
        %810 = vmatpush.msra.mxu0 %v727
        %811 = vmatmul.f32.gmra.mxu0 %v758
        %v812 = vpop.f32.mrf.mxu0
        %v813 = vadd.f32 %v765, %v812
        %814 = vmatmul.f32.gmra.mxu0 %v759
        %v815 = vpop.f32.mrf.mxu0
        %v816 = vadd.f32 %v770, %v815
        %817 = vdwg.mxu0
        %v818 = vld [vmem:[%s269] sm:$0xff]
        %v819 = vld [vmem:[%s269 + $0x8] sm:$0xff]
        %v820 = vunpack.c.l.bf16 %v818
        %v821 = vunpack.c.h.bf16 %v818
        %v822 = vunpack.c.l.bf16 %v819
        %v823 = vunpack.c.h.bf16 %v819
        %v824 = vmul.f32 %v790, %v820
        %v825 = vmul.f32 %v813, %v821
        %v826 = vmul.f32 %v793, %v822
        %v827 = vmul.f32 %v816, %v823
        %v828 = vadd.f32 %v270, %v824
        %v829 = vadd.f32 %v271, %v825
        %v830 = vadd.f32 %v272, %v826
        %v831 = vadd.f32 %v273, %v827
        %v834 = vrot.slane %v828, 3
        %v835 = vrot.slane %v829, 3
        %838 = vrot.lane.b32.xlu0 %v834, 1
        %v839 = vpop.permute.xlu0 %838
        %840 = vrot.lane.b32.xlu0 %v835, 1
        %v841 = vpop.permute.xlu0 %840
        %v842 = vsel %vm295, %v839, %v841
        %v843 = vsel %vm295, %v841, %v839
        %v844 = vsel %vm279, %v843, 0.0
        %v845 = vsel %vm280, %v842, 0.0
        %846 = vrot.lane.b32.xlu0 %v834, 127
        %v847 = vpop.permute.xlu0 %846
        %848 = vrot.lane.b32.xlu0 %v835, 127
        %v849 = vpop.permute.xlu0 %848
        %v850 = vsel %vm316, %v847, %v849
        %v851 = vsel %vm316, %v849, %v847
        %v852 = vsel %vm281, %v850, 0.0
        %v853 = vsel %vm282, %v851, 0.0
        %v854 = vmax.f32 %v844, %v852
        %v855 = vmax.f32 %v845, %v853
        %v856 = vmax.f32 %v854, %v834
        %v857 = vmax.f32 %v855, %v835
        %858 = vrot.lane.b32.xlu0 %v856, 16
        %v859 = vpop.permute.xlu0 %858
        %860 = vrot.lane.b32.xlu0 %v857, 16
        %v861 = vpop.permute.xlu0 %860
        %v862 = vsel %vm353, %v859, %v861
        %v863 = vsel %vm353, %v861, %v859
        %v864 = vsel %vm283, %v863, 0.0
        %v865 = vsel %vm284, %v862, 0.0
        %866 = vrot.lane.b32.xlu0 %v856, 112
        %v867 = vpop.permute.xlu0 %866
        %868 = vrot.lane.b32.xlu0 %v857, 112
        %v869 = vpop.permute.xlu0 %868
        %v870 = vsel %vm382, %v867, %v869
        %v871 = vsel %vm382, %v869, %v867
        %v872 = vsel %vm285, %v870, 0.0
        %v873 = vsel %vm286, %v871, 0.0
        %v874 = vmax.f32 %v864, %v872
        %v875 = vmax.f32 %v865, %v873
        %v876 = vmax.f32 %v874, %v856
        %v877 = vmax.f32 %v875, %v857
        %vm878 = vcmp.gt.f32.partialorder %v876, 0.1
        %vm879 = vcmp.gt.f32.partialorder %v877, 0.1
        %v880 = vsel %vm878, 1, 0
        %v881 = vsel %vm879, 1, 0
        %v882 = vcvt.s32.f32 %v880
        %v883 = vcvt.s32.f32 %v881
        %v884 = vperm.slane %v882, 0
        %v885 = vperm.slane %v883, 0
        %v886 = vmul.f32 %v828, %v884
        %v887 = vmul.f32 %v829, %v885
        %v888 = vmul.f32 %v830, %v884
        %v889 = vmul.f32 %v831, %v885
        %890 = vst [vmem:[%s259] sm:$0xff] %v886
        %891 = vst [vmem:[%s259 + $0x8] sm:$0xff] %v887
        %892 = vst [vmem:[%s259 + $0x10] sm:$0xff] %v888
        %893 = vst [vmem:[%s259 + $0x18] sm:$0xff] %v889
        %s894 = sand.u32 %s164, 1
        %s895 = scalar_lea.sflag [#allocation3], %s894
        %s896 = sand.u32 %s164, 1
        %s897 = smul.addr %s896, 32
        %s898 = scalar_lea.vmem [#allocation2], %s897
        // Predicated region
        $region45: #{tpu_custom_call.1} parent=43 // pred_check
          %p899 = pneg %p174
        $region46: #{tpu_custom_call.1} parent=43 // pred_check_branch
          %901 = sbr.rel (%p899) target = $region48
        $region47: #{tpu_custom_call.1} parent=43 // pred_region
          %903 = vsyncadd %s895, 0
          %s904 = smul.addr %s20, 4
          %s905 = smul.addr %s904, 8
          %s906 = scalar_lea.hbm %s6, %s905
          %s907 = sshll.u32 %s898, 4
          %s908 = int_to_ptr.vmem [resolvable:$true] %s907
          %s909 = sshll.u32 %s906, 4
          %s910 = int_to_ptr.hbm [resolvable:$true] %s909
          %915 = dma.vmem_to_hbm [thread:$0]  %s908, 512, %s910, %s895, 256, 256, 16
        $region48: #{tpu_custom_call.1} parent=43 // pred_fallthru
          _
      $region44: #{tpu_custom_call.1} parent=5 // pred_fallthru
        _
      %p916 = scmp.le.s32.totalorder 2, %s15
      // Predicated region
      $region49: #{tpu_custom_call.1} parent=5 // pred_check
        %p917 = pneg %p916
      $region50: #{tpu_custom_call.1} parent=5 // pred_check_branch
        %919 = sbr.rel (%p917) target = $region52
      $region51: #{tpu_custom_call.1} parent=5 // pred_region
        %s920 = ssub.s32 %s15, 2
        // Predicated region
        $region53: #{tpu_custom_call.1} parent=51 // pred_check
          %p921 = pneg %p180
        $region54: #{tpu_custom_call.1} parent=51 // pred_check_branch
          %923 = sbr.rel (%p921) target = $region56
        $region55: #{tpu_custom_call.1} parent=51 // pred_region
          %s924 = sand.u32 %s165, 1
          %s925 = scalar_lea.sflag [#allocation3], %s924
          %s926 = sand.u32 %s165, 1
          %s927 = smul.addr %s926, 32
          %s928 = scalar_lea.vmem [#allocation2], %s927
          %930 = dma.done %s925, 512
        $region56: #{tpu_custom_call.1} parent=51 // pred_fallthru
          _
      $region52: #{tpu_custom_call.1} parent=5 // pred_fallthru
        _
    $region6: #{tpu_custom_call.1} parent=1 // loop_footer
      %s19 = sadd.s32 1, %s15
    $region7: #{tpu_custom_call.1} parent=1 // loop_footer_branch
      %14 = sbr.rel target = $region3
    $region8: #{tpu_custom_call.1} parent=1 // loop_exit
      _
    %931 = vsyncpa [#allocation3], 1
    %s932 = scalar_lea.sflag [#allocation3], 1
    %933 = vsyncpa %s932, 1

</llo_original>
